<compile_context>
chip_gen: v5e
topology: v5e:2x2
jax: 0.10.0
libtpu: 0.0.40
codegen_flags: <defaults>
</compile_context>

<pallas_src>
import functools
import math

import jax
import jax.numpy as jnp
from jax import lax
from jax.experimental import pallas as pl
from jax.experimental.pallas import tpu as pltpu

_EPS = 1e-8          # torch.nn.functional.cosine_similarity eps
_LO, _HI = 0.13, 0.32


def _segment_sum_bcast_multi(xs, seg_w, lane):
    """Sum each array in `xs` over aligned `seg_w`-wide lane segments and
    broadcast each segment sum back to every lane of its segment.

    Exact recursive-doubling XOR butterfly: log2(seg_w) passes of
    (2 lane-rolls + 1 select + 1 add) per array. The select mask depends only
    on the lane index, so it is computed once per pass and shared by all arrays."""
    xs = list(xs)
    L = xs[0].shape[-1]
    axis = xs[0].ndim - 1
    k = 1
    while k < seg_w:
        take_fwd = (lane & k) == 0                        # (1, L) — once per pass
        for n, x in enumerate(xs):
            fwd = pltpu.roll(x, shift=L - k, axis=axis)   # lane i <- x[i + k]
            bwd = pltpu.roll(x, shift=k, axis=axis)       # lane i <- x[i - k]
            # Partner index i ^ k never crosses an aligned seg_w segment.
            xs[n] = x + jnp.where(take_fwd, fwd, bwd)
        k *= 2
    return xs


def _cloak_kernel(*refs, W, R, use_mxu):
    if use_mxu:
        o_ref, s_ref, seg_ref, out_ref = refs
    else:
        o_ref, s_ref, out_ref = refs
        seg_ref = None

    o = o_ref[...]                       # (rows_blk, L); single load per tile,
    s = s_ref[...]                       # reused for the score and the select.
    of = o.astype(jnp.float32)
    sf = s.astype(jnp.float32)
    rows_blk, L = of.shape

    # Small broadcastable index vectors only (no full-block int32 iotas).
    lane = lax.broadcasted_iota(jnp.int32, (1, L), 1)          # lane within row
    row = lax.broadcasted_iota(jnp.int32, (rows_blk, 1), 0)    # row within block
    grow = pl.program_id(0) * rows_blk + row                   # global row = c*R + r

    prods = (of * sf, of * of, sf * sf)
    if use_mxu:
        # Idle-MXU segment sum: y = x @ S with S the 128x128 block-diagonal
        # ones matrix (W x W blocks), resident in VMEM across the whole grid.
        S = seg_ref[...]
        dot, oo, ss = (jnp.dot(p, S, preferred_element_type=jnp.float32)
                       for p in prods)
    else:
        dot, oo, ss = _segment_sum_bcast_multi(prods, W, lane)

    # torch cosine_similarity:  dot / sqrt(clamp(||o||^2 * ||s||^2, eps^2)).
    # rsqrt runs on the otherwise-idle EUP; no divide / sqrt on the VPU.
    # (Assumes ||o||^2 * ||s||^2 stays within f32 range, i.e. moderate inputs.)
    score = dot * lax.rsqrt(jnp.maximum(oo * ss, _EPS * _EPS))
    in_band = (score > _LO) & (score < _HI)

    # Row (c, h) is cloaked only for c >= 1 and h >= 1.
    #   c >= 1  <=>  global row >= R
    #   h >= 1  <=>  (sub-row r >= 1) or (lane >= W)      [r = global row % R]
    c_ge1 = grow >= R
    if R > 1:
        h_ge1 = ((grow % R) >= 1) | (lane >= W)
    else:
        h_ge1 = lane >= W
    mask = c_ge1 & h_ge1 & in_band

    out_ref[...] = jnp.where(mask, s, o)


def cloak_block(original, styled, *, max_block_bytes=None):
    """Pallas implementation of CloakBlock.forward(original, styled)."""
    assert original.shape == styled.shape, "original/styled must match"
    B, C, H, W = original.shape
    assert W > 0 and (W & (W - 1)) == 0, "requires a power-of-two W"
    # TODO(synk): non-power-of-two W needs a different in-row segment reduction.
    # TODO(synk): the PyTorch module also stashes inputs into globals og/st; that
    # has no effect on the returned value and is not reproduced here.
    HW = H * W
    itemsize = original.dtype.itemsize

    # ---- choose the in-kernel view ------------------------------------------
    # Preferred: 128-lane last axis (intra-vreg rotates, dense 8-row packing).
    # Fallback: flat (C, HW) lane axis (still correct, just slower rolls).
    if W <= 128 and HW % 128 == 0:
        L = 128
    else:
        L = HW
    R = HW // L                        # 128-lane sub-rows per channel
    rows_total = C * R
    o3 = original.reshape(B, rows_total, L)     # metadata-only reshapes
    s3 = styled.reshape(B, rows_total, L)
    use_mxu = (L == 128) and (W >= 64)

    # ---- chip-aware budgets ---------------------------------------------------
    try:
        big_vmem = pltpu.get_tpu_info().vmem_capacity_bytes >= (100 << 20)
    except Exception:
        big_vmem = False               # conservative (v7x-safe) default
    if max_block_bytes is None:
        max_block_bytes = (4 << 20) if big_vmem else (2 << 20)

    # ---- block size in whole channels -----------------------------------------
    # Validity: (c_blk * R) % 8 == 0 (the (8,128) rule) or c_blk == C.
    c_unit = 8 // math.gcd(R, 8)
    row_bytes = R * L * max(itemsize, 4)        # budget f32 temps, not raw bytes
    c_budget = max(1, max_block_bytes // row_bytes)
    c_target = pl.cdiv(C, 4)                    # aim for >= 4 grid steps so the
    c_cap = max(1, min(c_budget, c_target))     # pipeline can actually overlap
    c_blk = (c_cap // c_unit) * c_unit
    if c_blk == 0:
        c_blk = c_unit if c_unit <= C else C
    c_blk = min(c_blk, C)

    # Prefer an even number of grid steps (v7x: feed both TensorCores).
    def _steps(cb):
        return pl.cdiv(C, cb)
    if _steps(c_blk) > 1 and _steps(c_blk) % 2 == 1 and c_blk > c_unit:
        for cb in range(c_blk - c_unit, c_unit - 1, -c_unit):
            if _steps(cb) % 2 == 0:
                c_blk = cb
                break

    rows_blk = c_blk * R
    n_steps = _steps(c_blk)
    grid = (n_steps,)

    # ---- pipelining / VMEM budget ----------------------------------------------
    # Deeper input pipelining only on 128 MiB-VMEM parts (v5e/v6e) with a real
    # multi-step grid; skip on v7x where VMEM headroom is tight.
    in_bufs = 3 if (big_vmem and n_steps >= 3) else 2
    blk_in = rows_blk * L * itemsize
    blk_f32 = rows_blk * L * 4
    seg_bytes = (L * L * 4) if use_mxu else 0
    vmem_need = (2 * in_bufs + 2) * blk_in + 8 * blk_f32 + seg_bytes + (2 << 20)
    vmem_cap = (96 << 20) if big_vmem else (48 << 20)
    vmem_limit = int(min(vmem_cap, max(vmem_need, 16 << 20)))

    def _idx(i):
        return (0, i, 0)               # batch 0 only; batches >= 1 pass through

    if in_bufs > 2:
        in_spec = pl.BlockSpec((None, rows_blk, L), _idx,
                               pipeline_mode=pl.Buffered(in_bufs))
    else:
        in_spec = pl.BlockSpec((None, rows_blk, L), _idx)
    out_spec = pl.BlockSpec((None, rows_blk, L), _idx)

    inputs = [o3, s3]
    in_specs = [in_spec, in_spec]
    if use_mxu:
        li = lax.broadcasted_iota(jnp.int32, (L, L), 0)
        lj = lax.broadcasted_iota(jnp.int32, (L, L), 1)
        seg = ((li // W) == (lj // W)).astype(jnp.float32)
        inputs.append(seg)
        # Constant block index -> stays resident in VMEM across the grid.
        in_specs.append(pl.BlockSpec((L, L), lambda i: (0, 0)))

    kernel = functools.partial(_cloak_kernel, W=W, R=R, use_mxu=use_mxu)

    out3 = pl.pallas_call(
        kernel,
        out_shape=jax.ShapeDtypeStruct(o3.shape, o3.dtype),
        grid=grid,
        in_specs=in_specs,
        out_specs=out_spec,
        # Output aliases `original`: batches 1.. (never touched by the grid)
        # pass through with no extra HBM read/write traffic.
        input_output_aliases={0: 0},
        compiler_params=pltpu.CompilerParams(
            dimension_semantics=("parallel",),
            vmem_limit_bytes=vmem_limit,
        ),
    )(*inputs)
    return out3.reshape(B, C, H, W)


def _reference(original, styled):
    """Pure-JAX mirror of the PyTorch loops (for verification)."""
    o0 = original[0].astype(jnp.float32)
    s0 = styled[0].astype(jnp.float32)
    dot = jnp.sum(o0 * s0, axis=-1)
    denom = jnp.maximum(
        jnp.linalg.norm(o0, axis=-1) * jnp.linalg.norm(s0, axis=-1), _EPS)
    score = dot / denom
    C, H = score.shape
    c_idx = lax.broadcasted_iota(jnp.int32, (C, H), 0)
    h_idx = lax.broadcasted_iota(jnp.int32, (C, H), 1)
    mask = (c_idx >= 1) & (h_idx >= 1) & (score > _LO) & (score < _HI)
    cloaked0 = jnp.where(mask[..., None], styled[0], original[0])
    return original.at[0].set(cloaked0)


if __name__ == "__main__":
    key = jax.random.PRNGKey(0)
    k1, k2 = jax.random.split(key)
    B, C, H, W = 2, 4, 16, 16
    original = jax.random.normal(k1, (B, C, H, W), dtype=jnp.float32)
    styled = jax.random.normal(k2, (B, C, H, W), dtype=jnp.float32)

    # Reference computed first (kernel output aliases its first operand).
    ref = jax.block_until_ready(_reference(original, styled))

    out = jax.block_until_ready(cloak_block(original, styled))

    assert out.shape == original.shape and out.dtype == original.dtype
    assert jnp.allclose(out, ref, atol=1e-5, rtol=1e-5), "mismatch vs reference"
    print("KERNEL_OK")
</pallas_src>

<mosaic_0001>
module attributes {stable_mosaic.version = 11 : i64} {
  func.func @_cloak_kernel(%arg0: i32, %arg1: memref<1x8x128xf32, #tpu.memory_space<vmem>>, %arg2: memref<1x8x128xf32, #tpu.memory_space<vmem>>, %arg3: memref<1x8x128xf32, #tpu.memory_space<vmem>>) attributes {dimension_semantics = [#tpu.dimension_semantics<parallel>], iteration_bounds = array<i64: 1>, scalar_prefetch = 0 : i64, scratch_operands = 0 : i64, tpu.core_type = #tpu.core_type<tc>, window_params = [{transform_indices = @transform_0, window_bounds = array<i64: 1, 8, 128>}, {transform_indices = @transform_1, window_bounds = array<i64: 1, 8, 128>}, {transform_indices = @transform_2, window_bounds = array<i64: 1, 8, 128>}]} {
    %c0 = arith.constant 0 : index
    %c0_0 = arith.constant 0 : index
    %c0_1 = arith.constant 0 : index
    %0 = vector.load %arg1[%c0, %c0_0, %c0_1] : memref<1x8x128xf32, #tpu.memory_space<vmem>>, vector<1x8x128xf32>
    %1 = vector.shape_cast %0 : vector<1x8x128xf32> to vector<8x128xf32>
    %c0_2 = arith.constant 0 : index
    %c0_3 = arith.constant 0 : index
    %c0_4 = arith.constant 0 : index
    %2 = vector.load %arg2[%c0_2, %c0_3, %c0_4] : memref<1x8x128xf32, #tpu.memory_space<vmem>>, vector<1x8x128xf32>
    %3 = vector.shape_cast %2 : vector<1x8x128xf32> to vector<8x128xf32>
    %4 = tpu.iota {dimensions = array<i32: 1>} : vector<1x128xi32>
    %5 = tpu.iota {dimensions = array<i32: 0>} : vector<8x1xi32>
    %c8_i32 = arith.constant 8 : i32
    %6 = arith.muli %arg0, %c8_i32 : i32
    %7 = vector.broadcast %6 : i32 to vector<8x1xi32>
    %8 = arith.addi %7, %5 : vector<8x1xi32>
    %9 = arith.mulf %1, %3 : vector<8x128xf32>
    %10 = arith.mulf %1, %1 : vector<8x128xf32>
    %11 = arith.mulf %3, %3 : vector<8x128xf32>
    %c1_i32 = arith.constant 1 : i32
    %12 = vector.broadcast %c1_i32 : i32 to vector<1x128xi32>
    %13 = arith.andi %4, %12 : vector<1x128xi32>
    %c0_i32 = arith.constant 0 : i32
    %14 = vector.broadcast %c0_i32 : i32 to vector<1x128xi32>
    %15 = arith.cmpi eq, %13, %14 : vector<1x128xi32>
    %c127_i32 = arith.constant 127 : i32
    %16 = tpu.dynamic_rotate %9 by %c127_i32 dim 1 : vector<8x128xf32>, i32 -> vector<8x128xf32>
    %c1_i32_5 = arith.constant 1 : i32
    %17 = tpu.dynamic_rotate %9 by %c1_i32_5 dim 1 : vector<8x128xf32>, i32 -> vector<8x128xf32>
    %18 = vector.shape_cast %15 : vector<1x128xi1> to vector<1x128xi1>
    %19 = vector.broadcast %18 : vector<1x128xi1> to vector<8x128xi1>
    %20 = arith.select %19, %16, %17 : vector<8x128xi1>, vector<8x128xf32>
    %21 = arith.addf %9, %20 : vector<8x128xf32>
    %c127_i32_6 = arith.constant 127 : i32
    %22 = tpu.dynamic_rotate %10 by %c127_i32_6 dim 1 : vector<8x128xf32>, i32 -> vector<8x128xf32>
    %c1_i32_7 = arith.constant 1 : i32
    %23 = tpu.dynamic_rotate %10 by %c1_i32_7 dim 1 : vector<8x128xf32>, i32 -> vector<8x128xf32>
    %24 = vector.shape_cast %15 : vector<1x128xi1> to vector<1x128xi1>
    %25 = vector.broadcast %24 : vector<1x128xi1> to vector<8x128xi1>
    %26 = arith.select %25, %22, %23 : vector<8x128xi1>, vector<8x128xf32>
    %27 = arith.addf %10, %26 : vector<8x128xf32>
    %c127_i32_8 = arith.constant 127 : i32
    %28 = tpu.dynamic_rotate %11 by %c127_i32_8 dim 1 : vector<8x128xf32>, i32 -> vector<8x128xf32>
    %c1_i32_9 = arith.constant 1 : i32
    %29 = tpu.dynamic_rotate %11 by %c1_i32_9 dim 1 : vector<8x128xf32>, i32 -> vector<8x128xf32>
    %30 = vector.shape_cast %15 : vector<1x128xi1> to vector<1x128xi1>
    %31 = vector.broadcast %30 : vector<1x128xi1> to vector<8x128xi1>
    %32 = arith.select %31, %28, %29 : vector<8x128xi1>, vector<8x128xf32>
    %33 = arith.addf %11, %32 : vector<8x128xf32>
    %c2_i32 = arith.constant 2 : i32
    %34 = vector.broadcast %c2_i32 : i32 to vector<1x128xi32>
    %35 = arith.andi %4, %34 : vector<1x128xi32>
    %c0_i32_10 = arith.constant 0 : i32
    %36 = vector.broadcast %c0_i32_10 : i32 to vector<1x128xi32>
    %37 = arith.cmpi eq, %35, %36 : vector<1x128xi32>
    %c126_i32 = arith.constant 126 : i32
    %38 = tpu.dynamic_rotate %21 by %c126_i32 dim 1 : vector<8x128xf32>, i32 -> vector<8x128xf32>
    %c2_i32_11 = arith.constant 2 : i32
    %39 = tpu.dynamic_rotate %21 by %c2_i32_11 dim 1 : vector<8x128xf32>, i32 -> vector<8x128xf32>
    %40 = vector.shape_cast %37 : vector<1x128xi1> to vector<1x128xi1>
    %41 = vector.broadcast %40 : vector<1x128xi1> to vector<8x128xi1>
    %42 = arith.select %41, %38, %39 : vector<8x128xi1>, vector<8x128xf32>
    %43 = arith.addf %21, %42 : vector<8x128xf32>
    %c126_i32_12 = arith.constant 126 : i32
    %44 = tpu.dynamic_rotate %27 by %c126_i32_12 dim 1 : vector<8x128xf32>, i32 -> vector<8x128xf32>
    %c2_i32_13 = arith.constant 2 : i32
    %45 = tpu.dynamic_rotate %27 by %c2_i32_13 dim 1 : vector<8x128xf32>, i32 -> vector<8x128xf32>
    %46 = vector.shape_cast %37 : vector<1x128xi1> to vector<1x128xi1>
    %47 = vector.broadcast %46 : vector<1x128xi1> to vector<8x128xi1>
    %48 = arith.select %47, %44, %45 : vector<8x128xi1>, vector<8x128xf32>
    %49 = arith.addf %27, %48 : vector<8x128xf32>
    %c126_i32_14 = arith.constant 126 : i32
    %50 = tpu.dynamic_rotate %33 by %c126_i32_14 dim 1 : vector<8x128xf32>, i32 -> vector<8x128xf32>
    %c2_i32_15 = arith.constant 2 : i32
    %51 = tpu.dynamic_rotate %33 by %c2_i32_15 dim 1 : vector<8x128xf32>, i32 -> vector<8x128xf32>
    %52 = vector.shape_cast %37 : vector<1x128xi1> to vector<1x128xi1>
    %53 = vector.broadcast %52 : vector<1x128xi1> to vector<8x128xi1>
    %54 = arith.select %53, %50, %51 : vector<8x128xi1>, vector<8x128xf32>
    %55 = arith.addf %33, %54 : vector<8x128xf32>
    %c4_i32 = arith.constant 4 : i32
    %56 = vector.broadcast %c4_i32 : i32 to vector<1x128xi32>
    %57 = arith.andi %4, %56 : vector<1x128xi32>
    %c0_i32_16 = arith.constant 0 : i32
    %58 = vector.broadcast %c0_i32_16 : i32 to vector<1x128xi32>
    %59 = arith.cmpi eq, %57, %58 : vector<1x128xi32>
    %c124_i32 = arith.constant 124 : i32
    %60 = tpu.dynamic_rotate %43 by %c124_i32 dim 1 : vector<8x128xf32>, i32 -> vector<8x128xf32>
    %c4_i32_17 = arith.constant 4 : i32
    %61 = tpu.dynamic_rotate %43 by %c4_i32_17 dim 1 : vector<8x128xf32>, i32 -> vector<8x128xf32>
    %62 = vector.shape_cast %59 : vector<1x128xi1> to vector<1x128xi1>
    %63 = vector.broadcast %62 : vector<1x128xi1> to vector<8x128xi1>
    %64 = arith.select %63, %60, %61 : vector<8x128xi1>, vector<8x128xf32>
    %65 = arith.addf %43, %64 : vector<8x128xf32>
    %c124_i32_18 = arith.constant 124 : i32
    %66 = tpu.dynamic_rotate %49 by %c124_i32_18 dim 1 : vector<8x128xf32>, i32 -> vector<8x128xf32>
    %c4_i32_19 = arith.constant 4 : i32
    %67 = tpu.dynamic_rotate %49 by %c4_i32_19 dim 1 : vector<8x128xf32>, i32 -> vector<8x128xf32>
    %68 = vector.shape_cast %59 : vector<1x128xi1> to vector<1x128xi1>
    %69 = vector.broadcast %68 : vector<1x128xi1> to vector<8x128xi1>
    %70 = arith.select %69, %66, %67 : vector<8x128xi1>, vector<8x128xf32>
    %71 = arith.addf %49, %70 : vector<8x128xf32>
    %c124_i32_20 = arith.constant 124 : i32
    %72 = tpu.dynamic_rotate %55 by %c124_i32_20 dim 1 : vector<8x128xf32>, i32 -> vector<8x128xf32>
    %c4_i32_21 = arith.constant 4 : i32
    %73 = tpu.dynamic_rotate %55 by %c4_i32_21 dim 1 : vector<8x128xf32>, i32 -> vector<8x128xf32>
    %74 = vector.shape_cast %59 : vector<1x128xi1> to vector<1x128xi1>
    %75 = vector.broadcast %74 : vector<1x128xi1> to vector<8x128xi1>
    %76 = arith.select %75, %72, %73 : vector<8x128xi1>, vector<8x128xf32>
    %77 = arith.addf %55, %76 : vector<8x128xf32>
    %c8_i32_22 = arith.constant 8 : i32
    %78 = vector.broadcast %c8_i32_22 : i32 to vector<1x128xi32>
    %79 = arith.andi %4, %78 : vector<1x128xi32>
    %c0_i32_23 = arith.constant 0 : i32
    %80 = vector.broadcast %c0_i32_23 : i32 to vector<1x128xi32>
    %81 = arith.cmpi eq, %79, %80 : vector<1x128xi32>
    %c120_i32 = arith.constant 120 : i32
    %82 = tpu.dynamic_rotate %65 by %c120_i32 dim 1 : vector<8x128xf32>, i32 -> vector<8x128xf32>
    %c8_i32_24 = arith.constant 8 : i32
    %83 = tpu.dynamic_rotate %65 by %c8_i32_24 dim 1 : vector<8x128xf32>, i32 -> vector<8x128xf32>
    %84 = vector.shape_cast %81 : vector<1x128xi1> to vector<1x128xi1>
    %85 = vector.broadcast %84 : vector<1x128xi1> to vector<8x128xi1>
    %86 = arith.select %85, %82, %83 : vector<8x128xi1>, vector<8x128xf32>
    %87 = arith.addf %65, %86 : vector<8x128xf32>
    %c120_i32_25 = arith.constant 120 : i32
    %88 = tpu.dynamic_rotate %71 by %c120_i32_25 dim 1 : vector<8x128xf32>, i32 -> vector<8x128xf32>
    %c8_i32_26 = arith.constant 8 : i32
    %89 = tpu.dynamic_rotate %71 by %c8_i32_26 dim 1 : vector<8x128xf32>, i32 -> vector<8x128xf32>
    %90 = vector.shape_cast %81 : vector<1x128xi1> to vector<1x128xi1>
    %91 = vector.broadcast %90 : vector<1x128xi1> to vector<8x128xi1>
    %92 = arith.select %91, %88, %89 : vector<8x128xi1>, vector<8x128xf32>
    %93 = arith.addf %71, %92 : vector<8x128xf32>
    %c120_i32_27 = arith.constant 120 : i32
    %94 = tpu.dynamic_rotate %77 by %c120_i32_27 dim 1 : vector<8x128xf32>, i32 -> vector<8x128xf32>
    %c8_i32_28 = arith.constant 8 : i32
    %95 = tpu.dynamic_rotate %77 by %c8_i32_28 dim 1 : vector<8x128xf32>, i32 -> vector<8x128xf32>
    %96 = vector.shape_cast %81 : vector<1x128xi1> to vector<1x128xi1>
    %97 = vector.broadcast %96 : vector<1x128xi1> to vector<8x128xi1>
    %98 = arith.select %97, %94, %95 : vector<8x128xi1>, vector<8x128xf32>
    %99 = arith.addf %77, %98 : vector<8x128xf32>
    %100 = arith.mulf %93, %99 : vector<8x128xf32>
    %cst = arith.constant 1.000000e-16 : f32
    %101 = vector.broadcast %cst : f32 to vector<8x128xf32>
    %102 = arith.maximumf %100, %101 : vector<8x128xf32>
    %103 = math.rsqrt %102 : vector<8x128xf32>
    %104 = arith.mulf %87, %103 : vector<8x128xf32>
    %cst_29 = arith.constant 1.300000e-01 : f32
    %105 = vector.broadcast %cst_29 : f32 to vector<8x128xf32>
    %106 = arith.cmpf ogt, %104, %105 : vector<8x128xf32>
    %cst_30 = arith.constant 3.200000e-01 : f32
    %107 = vector.broadcast %cst_30 : f32 to vector<8x128xf32>
    %108 = arith.cmpf olt, %104, %107 : vector<8x128xf32>
    %109 = arith.andi %106, %108 : vector<8x128xi1>
    %c2_i32_31 = arith.constant 2 : i32
    %110 = vector.broadcast %c2_i32_31 : i32 to vector<8x1xi32>
    %111 = arith.cmpi sge, %8, %110 : vector<8x1xi32>
    %c2_i32_32 = arith.constant 2 : i32
    %c0_i32_33 = arith.constant 0 : i32
    %112 = arith.cmpi eq, %c2_i32_32, %c0_i32_33 : i32
    %c1_i32_34 = arith.constant 1 : i32
    %113 = arith.select %112, %c1_i32_34, %c2_i32_32 : i32
    %114 = vector.broadcast %113 : i32 to vector<8x1xi32>
    %115 = arith.remsi %8, %114 : vector<8x1xi32>
    %c0_i32_35 = arith.constant 0 : i32
    %116 = vector.broadcast %c0_i32_35 : i32 to vector<8x1xi32>
    %117 = arith.cmpi ne, %115, %116 : vector<8x1xi32>
    %c0_i32_36 = arith.constant 0 : i32
    %118 = vector.broadcast %c0_i32_36 : i32 to vector<8x1xi32>
    %119 = arith.cmpi slt, %115, %118 : vector<8x1xi32>
    %c0_i32_37 = arith.constant 0 : i32
    %120 = arith.cmpi slt, %113, %c0_i32_37 : i32
    %121 = vector.broadcast %120 : i1 to vector<8x1xi1>
    %122 = vector.broadcast %121 : vector<8x1xi1> to vector<8x1xi1>
    %123 = arith.xori %119, %122 : vector<8x1xi1>
    %124 = arith.andi %123, %117 : vector<8x1xi1>
    %125 = vector.broadcast %113 : i32 to vector<8x1xi32>
    %126 = arith.addi %115, %125 : vector<8x1xi32>
    %127 = arith.select %124, %126, %115 : vector<8x1xi1>, vector<8x1xi32>
    %c1_i32_38 = arith.constant 1 : i32
    %128 = vector.broadcast %c1_i32_38 : i32 to vector<8x1xi32>
    %129 = arith.cmpi sge, %127, %128 : vector<8x1xi32>
    %c16_i32 = arith.constant 16 : i32
    %130 = vector.broadcast %c16_i32 : i32 to vector<1x128xi32>
    %131 = arith.cmpi sge, %4, %130 : vector<1x128xi32>
    %132 = vector.broadcast %129 : vector<8x1xi1> to vector<8x128xi1>
    %133 = vector.broadcast %131 : vector<1x128xi1> to vector<8x128xi1>
    %134 = arith.ori %132, %133 : vector<8x128xi1>
    %135 = vector.broadcast %111 : vector<8x1xi1> to vector<8x128xi1>
    %136 = arith.andi %135, %134 : vector<8x128xi1>
    %137 = arith.andi %136, %109 : vector<8x128xi1>
    %138 = arith.select %137, %3, %1 : vector<8x128xi1>, vector<8x128xf32>
    %c0_39 = arith.constant 0 : index
    %c0_40 = arith.constant 0 : index
    %c0_41 = arith.constant 0 : index
    %139 = vector.load %arg3[%c0_39, %c0_40, %c0_41] : memref<1x8x128xf32, #tpu.memory_space<vmem>>, vector<1x8x128xf32>
    %140 = vector.shape_cast %139 : vector<1x8x128xf32> to vector<8x128xf32>
    %141 = vector.shape_cast %138 : vector<8x128xf32> to vector<1x8x128xf32>
    tpu.vector_store %arg3[%c0_39, %c0_40, %c0_41], %141 {strides = array<i32>} : memref<1x8x128xf32, #tpu.memory_space<vmem>>, vector<1x8x128xf32>,
    return
  }
  func.func @transform_0(%arg0: i32) -> (i32, i32, i32) {
    %c0_i32 = arith.constant 0 : i32
    %c0_i32_0 = arith.constant 0 : i32
    %c0_i32_1 = arith.constant 0 : i32
    return %c0_i32, %arg0, %c0_i32_0 : i32, i32, i32
  }
  func.func @transform_1(%arg0: i32) -> (i32, i32, i32) {
    %c0_i32 = arith.constant 0 : i32
    %c0_i32_0 = arith.constant 0 : i32
    %c0_i32_1 = arith.constant 0 : i32
    return %c0_i32, %arg0, %c0_i32_0 : i32, i32, i32
  }
  func.func @transform_2(%arg0: i32) -> (i32, i32, i32) {
    %c0_i32 = arith.constant 0 : i32
    %c0_i32_0 = arith.constant 0 : i32
    %c0_i32_1 = arith.constant 0 : i32
    return %c0_i32, %arg0, %c0_i32_0 : i32, i32, i32
  }
}

</mosaic_0001>

<llo_original>
// kernel: tpu_custom_call.1
$region0: #{tpu_custom_call.1}
  #allocation0 [shape = 'u32[]', space=smem, size = 0x4, offset = 0x4, fixed_abs, tag = 'smem constant byte address 0x4 - core index']
  #allocation1 [shape = 'u32[72,128]{1,0:T(1,128)}', space=vmem, size = 0x9000, scoped, tag = 'internal scratch']
  %s0 = inlined_call_operand.hbm [shape: f32[2,8,128], index: 0, kind: input, shape index: {}, may-alias: {0,2}]
  %s1 = inlined_call_operand.vmem [shape: f32[2,8,128], index: 1, kind: input, shape index: {}]
  %s2 = inlined_call_operand.hbm [shape: f32[2,8,128], index: 2, kind: output, shape index: {}, may-alias: {0,2}]
  %s3 = sld [smem:[#allocation0]]
  $region22: #{tpu_custom_call.1} parent=0
    _
  %s5 = ssub.s32 1, %s3
  %s6 = scalar_select 0, %s5, %s3
  $region1: #{tpu_custom_call.1} parent=0
    #allocation2 [shape = 'u8[4096]{0}', space=vmem, size = 0x1000, scoped, tag = 'input window, operand 0, single buffered']
    #allocation3 [shape = 's32[1]{0}', space=sflag, size = 0x4, scoped, tag = 'scoped memory for tpu_custom_call.1']
    #allocation4 [shape = 's32[1]{0}', space=sflag, size = 0x4, scoped, tag = 'scoped memory for tpu_custom_call.1']
    #allocation5 [shape = 'u8[4096]{0}', space=vmem, size = 0x1000, scoped, tag = 'output window, operand 0, single buffered']
    %7 = vsyncpa [#allocation3], 0
    %8 = vsyncpa [#allocation4], 0
    // Predicated region
    $region2: #{tpu_custom_call.1} parent=1 // pred_check
      _
    $region3: #{tpu_custom_call.1} parent=1 // pred_check_branch
      %10 = sbr.rel (0) target = $region5
    $region4: #{tpu_custom_call.1} parent=1 // pred_region
      %12 = vsyncadd [#allocation3], 0
      %s14 = sshll.u32 %s0, 4
      %s15 = int_to_ptr.hbm [resolvable:$true] %s14
      %s16 = sshll.u32 [#allocation2], 4
      %s17 = int_to_ptr.vmem [resolvable:$true] %s16
      %19 = dma.hbm_to_vmem [thread:$0]  %s15, 128, %s17, [#allocation3]
    $region5: #{tpu_custom_call.1} parent=1 // pred_fallthru
      _
    // Predicated region
    $region6: #{tpu_custom_call.1} parent=1 // pred_check
      _
    $region7: #{tpu_custom_call.1} parent=1 // pred_check_branch
      %21 = sbr.rel (0) target = $region9
    $region8: #{tpu_custom_call.1} parent=1 // pred_region
      _
    $region9: #{tpu_custom_call.1} parent=1 // pred_fallthru
      _
    // Predicated region
    $region10: #{tpu_custom_call.1} parent=1 // pred_check
      _
    $region11: #{tpu_custom_call.1} parent=1 // pred_check_branch
      %23 = sbr.rel (0) target = $region13
    $region12: #{tpu_custom_call.1} parent=1 // pred_region
      %25 = dma.done [#allocation3], 128
    $region13: #{tpu_custom_call.1} parent=1 // pred_fallthru
      _
    %v26 = vld [vmem:[#allocation2] sm:$0xff]
    %v27 = vld [vmem:[%s1] sm:$0xff]
    %v28 = vlaneseq
    %v29 = vand.u32 %v28, 127
    %v30 = vlaneseq
    %v31 = vshrl.u32 %v30, 7
    %s32 = smul.u32 0, 8
    %v33 = vstv %s32
    %v34 = vadd.s32 %v33, %v31
    %v35 = vmul.f32 %v26, %v27
    %v36 = vmul.f32 %v26, %v26
    %v37 = vmul.f32 %v27, %v27
    %v38 = vand.u32 %v29, 1
    %vm39 = vcmp.eq.s32.totalorder %v38, 0
    %40 = vrot.lane.b32.xlu0 %v35, 127
    %v41 = vpop.permute.xlu0 %40
    %42 = vrot.lane.b32.xlu0 %v35, 1
    %v43 = vpop.permute.xlu0 %42
    %v44 = vsel %vm39, 1, 0
    %vm45 = vcmp.eq.s32.totalorder %v44, 1
    %v46 = vsel %vm45, %v41, %v43
    %v47 = vadd.f32 %v35, %v46
    %48 = vrot.lane.b32.xlu0 %v36, 127
    %v49 = vpop.permute.xlu0 %48
    %50 = vrot.lane.b32.xlu0 %v36, 1
    %v51 = vpop.permute.xlu0 %50
    %v52 = vsel %vm45, %v49, %v51
    %v53 = vadd.f32 %v36, %v52
    %54 = vrot.lane.b32.xlu0 %v37, 127
    %v55 = vpop.permute.xlu0 %54
    %56 = vrot.lane.b32.xlu0 %v37, 1
    %v57 = vpop.permute.xlu0 %56
    %v58 = vsel %vm45, %v55, %v57
    %v59 = vadd.f32 %v37, %v58
    %v60 = vand.u32 %v29, 2
    %vm61 = vcmp.eq.s32.totalorder %v60, 0
    %62 = vrot.lane.b32.xlu0 %v47, 126
    %v63 = vpop.permute.xlu0 %62
    %64 = vrot.lane.b32.xlu0 %v47, 2
    %v65 = vpop.permute.xlu0 %64
    %v66 = vsel %vm61, 1, 0
    %vm67 = vcmp.eq.s32.totalorder %v66, 1
    %v68 = vsel %vm67, %v63, %v65
    %v69 = vadd.f32 %v47, %v68
    %70 = vrot.lane.b32.xlu0 %v53, 126
    %v71 = vpop.permute.xlu0 %70
    %72 = vrot.lane.b32.xlu0 %v53, 2
    %v73 = vpop.permute.xlu0 %72
    %v74 = vsel %vm67, %v71, %v73
    %v75 = vadd.f32 %v53, %v74
    %76 = vrot.lane.b32.xlu0 %v59, 126
    %v77 = vpop.permute.xlu0 %76
    %78 = vrot.lane.b32.xlu0 %v59, 2
    %v79 = vpop.permute.xlu0 %78
    %v80 = vsel %vm67, %v77, %v79
    %v81 = vadd.f32 %v59, %v80
    %v82 = vand.u32 %v29, 4
    %vm83 = vcmp.eq.s32.totalorder %v82, 0
    %84 = vrot.lane.b32.xlu0 %v69, 124
    %v85 = vpop.permute.xlu0 %84
    %86 = vrot.lane.b32.xlu0 %v69, 4
    %v87 = vpop.permute.xlu0 %86
    %v88 = vsel %vm83, 1, 0
    %vm89 = vcmp.eq.s32.totalorder %v88, 1
    %v90 = vsel %vm89, %v85, %v87
    %v91 = vadd.f32 %v69, %v90
    %92 = vrot.lane.b32.xlu0 %v75, 124
    %v93 = vpop.permute.xlu0 %92
    %94 = vrot.lane.b32.xlu0 %v75, 4
    %v95 = vpop.permute.xlu0 %94
    %v96 = vsel %vm89, %v93, %v95
    %v97 = vadd.f32 %v75, %v96
    %98 = vrot.lane.b32.xlu0 %v81, 124
    %v99 = vpop.permute.xlu0 %98
    %100 = vrot.lane.b32.xlu0 %v81, 4
    %v101 = vpop.permute.xlu0 %100
    %v102 = vsel %vm89, %v99, %v101
    %v103 = vadd.f32 %v81, %v102
    %v104 = vand.u32 %v29, 8
    %vm105 = vcmp.eq.s32.totalorder %v104, 0
    %106 = vrot.lane.b32.xlu0 %v91, 120
    %v107 = vpop.permute.xlu0 %106
    %108 = vrot.lane.b32.xlu0 %v91, 8
    %v109 = vpop.permute.xlu0 %108
    %v110 = vsel %vm105, 1, 0
    %vm111 = vcmp.eq.s32.totalorder %v110, 1
    %v112 = vsel %vm111, %v107, %v109
    %v113 = vadd.f32 %v91, %v112
    %114 = vrot.lane.b32.xlu0 %v97, 120
    %v115 = vpop.permute.xlu0 %114
    %116 = vrot.lane.b32.xlu0 %v97, 8
    %v117 = vpop.permute.xlu0 %116
    %v118 = vsel %vm111, %v115, %v117
    %v119 = vadd.f32 %v97, %v118
    %120 = vrot.lane.b32.xlu0 %v103, 120
    %v121 = vpop.permute.xlu0 %120
    %122 = vrot.lane.b32.xlu0 %v103, 8
    %v123 = vpop.permute.xlu0 %122
    %v124 = vsel %vm111, %v121, %v123
    %v125 = vadd.f32 %v103, %v124
    %v126 = vmul.f32 %v119, %v125
    %v127 = vmax.f32 %v126, 1e-16
    %v128 = vrsqrt.pop %v127
    %v129 = vmul.f32 %v128, %v127
    %v130 = vmul.f32 %v129, %v128
    %v131 = vmul.f32 0.5, %v130
    %v132 = vsub.f32 1.5, %v131
    %v133 = vmul.f32 %v128, %v132
    %vm134 = vweird.f32 %v127
    %vm135 = vweird.f32 %v128
    %vm136 = vmor %vm134, %vm135
    %v137 = vsel %vm136, %v128, %v133
    %v138 = vmul.f32 %v113, %v137
    %vm139 = vcmp.gt.f32.partialorder %v138, 0.13
    %vm140 = vcmp.lt.f32.partialorder %v138, 0.32
    %vm141 = vmand %vm139, %vm140
    %vm142 = vcmp.ge.s32.totalorder %v34, 2
    %vm143 = vcmp.lt.s32.totalorder %v34, 0
    %v144 = vsub.s32 0, %v34
    %v145 = vsel %vm143, %v144, %v34
    %v146 = vshrl.u32 %v145, 1
    %v147 = vand.u32 %v145, 1
    %v148 = vsub.s32 0, %v147
    %v149 = vsel %vm143, %v148, %v147
    %vm150 = vcmp.ne.s32.totalorder %v149, 0
    %vm151 = vcmp.lt.s32.totalorder %v149, 0
    %vm152 = vmand %vm151, %vm150
    %v153 = vadd.s32 %v149, 2
    %v154 = vsel %vm152, %v153, %v149
    %vm155 = vcmp.ge.s32.totalorder %v154, 1
    %vm156 = vcmp.ge.s32.totalorder %v29, 16
    %v157 = vsel %vm155, 1, 0
    %vm158 = vcmp.eq.s32.totalorder %v157, 1
    %v159 = vsel %vm156, 1, 0
    %vm160 = vcmp.eq.s32.totalorder %v159, 1
    %vm161 = vmor %vm158, %vm160
    %v162 = vsel %vm142, 1, 0
    %vm163 = vcmp.eq.s32.totalorder %v162, 1
    %vm164 = vmand %vm163, %vm161
    %vm165 = vmand %vm164, %vm141
    %v166 = vsel %vm165, %v27, %v26
    %167 = vst [vmem:[#allocation5] sm:$0xff] %v166
    // Predicated region
    $region14: #{tpu_custom_call.1} parent=1 // pred_check
      _
    $region15: #{tpu_custom_call.1} parent=1 // pred_check_branch
      %169 = sbr.rel (0) target = $region17
    $region16: #{tpu_custom_call.1} parent=1 // pred_region
      %171 = vsyncadd [#allocation4], 0
      %s173 = sshll.u32 [#allocation5], 4
      %s174 = int_to_ptr.vmem [resolvable:$true] %s173
      %s175 = sshll.u32 %s2, 4
      %s176 = int_to_ptr.hbm [resolvable:$true] %s175
      %178 = dma.vmem_to_hbm [thread:$0]  %s174, 128, %s176, [#allocation4]
    $region17: #{tpu_custom_call.1} parent=1 // pred_fallthru
      _
    // Predicated region
    $region18: #{tpu_custom_call.1} parent=1 // pred_check
      _
    $region19: #{tpu_custom_call.1} parent=1 // pred_check_branch
      %180 = sbr.rel (0) target = $region21
    $region20: #{tpu_custom_call.1} parent=1 // pred_region
      %182 = dma.done [#allocation4], 128
    $region21: #{tpu_custom_call.1} parent=1 // pred_fallthru
      _
    %183 = vsyncpa [#allocation3], 1
    %184 = vsyncpa [#allocation4], 1

</llo_original>
